<compile_context>
chip_gen: v6e
topology: v6e:2x2x1
jax: 0.10.0
libtpu: 0.0.40
codegen_flags: <defaults>
</compile_context>

<pallas_src>
import jax
import jax.numpy as jnp
import numpy as np
from jax.experimental import pallas as pl
from jax.experimental.pallas import tpu as pltpu


def _proj_kernel(x_ref, w_ref, b_ref, p_ref):
    # x_ref: (1, S, F), w_ref: (F, H), b_ref: (1, 1, H), p_ref: (1, S, H)
    p_ref[0] = (jnp.dot(x_ref[0], w_ref[...],
                        preferred_element_type=jnp.float32)
                + b_ref[0])


def _rnn_rec_kernel(p_ref, h0_ref, w_hh_ref, out_ref, hlast_ref, h_scratch):
    # p_ref / out_ref: (B, T, H) time block; h0/hlast: (B, H); w_hh: (H, H).
    tb = pl.program_id(0)

    # Initialize the carried hidden state from h0 on the first grid step only.
    @pl.when(tb == 0)
    def _():
        h_scratch[...] = h0_ref[...].astype(jnp.float32)

    w_hh = w_hh_ref[...]
    p_blk = p_ref[...]                      # (B, T, H) f32, loaded once
    h = h_scratch[...]                      # (B, H) f32 carried state

    t_steps = p_ref.shape[1]                # static block size -> static unroll
    for i in range(t_steps):
        # Serial critical path per step: one HxH matmul + tanh.
        h = jnp.tanh(p_blk[:, i, :]
                     + jnp.dot(h, w_hh, preferred_element_type=jnp.float32))
        out_ref[:, i, :] = h.astype(out_ref.dtype)

    h_scratch[...] = h

    # Write the last-hidden output only on the final grid step (saves a cast
    # and a VMEM store on every other step).
    @pl.when(tb == pl.num_programs(0) - 1)
    def _():
        hlast_ref[...] = h.astype(hlast_ref.dtype)


def _pick_time_block(seq_len):
    # T must be a multiple of 8 (sublane rule) or equal the full sequence.
    for t in (64, 32, 16, 8):
        if seq_len % t == 0:
            return t
    return seq_len


def rnn_forward(x, w_in, w_hh, b_in, b_hh, hidden_state=None):
    """x: (B, S, F) float32. Returns (output (B, S, H), last_hidden (B, H))."""
    B, S, F = x.shape
    H = w_in.shape[0]
    if hidden_state is None:
        hidden_state = jnp.zeros((B, H), dtype=x.dtype)

    w_in_t = jnp.transpose(w_in).astype(jnp.float32)     # (F, H)
    w_hh_t = jnp.transpose(w_hh).astype(jnp.float32)     # (H, H)
    bias = (b_in + b_hh).reshape(1, 1, H).astype(jnp.float32)

    # ---- Stage 1: hoisted, fully parallel input projection ------------------
    p = pl.pallas_call(
        _proj_kernel,
        out_shape=jax.ShapeDtypeStruct((B, S, H), jnp.float32),
        grid_spec=pltpu.PrefetchScalarGridSpec(
            num_scalar_prefetch=0,
            grid=(B,),
            in_specs=[
                pl.BlockSpec((1, S, F), lambda bi: (bi, 0, 0)),   # x batch row
                pl.BlockSpec((F, H), lambda bi: (0, 0)),          # W_in^T
                pl.BlockSpec((1, 1, H), lambda bi: (0, 0, 0)),    # combined bias
            ],
            out_specs=pl.BlockSpec((1, S, H), lambda bi: (bi, 0, 0)),
        ),
        compiler_params=pltpu.CompilerParams(
            dimension_semantics=("parallel",)),
    )(x, w_in_t, bias)

    # ---- Stage 2: sequential recurrence over blocks of T time steps ---------
    T = _pick_time_block(S)
    n_tb = S // T

    cost = pl.CostEstimate(
        flops=2 * B * S * H * H,
        transcendentals=B * S * H,
        bytes_accessed=4 * (2 * B * S * H + H * H + 2 * B * H),
    )

    out, h_last = pl.pallas_call(
        _rnn_rec_kernel,
        out_shape=(jax.ShapeDtypeStruct((B, S, H), x.dtype),
                   jax.ShapeDtypeStruct((B, H), x.dtype)),
        grid_spec=pltpu.PrefetchScalarGridSpec(
            num_scalar_prefetch=0,
            grid=(n_tb,),
            in_specs=[
                pl.BlockSpec((B, T, H), lambda t: (0, t, 0)),   # P time block
                pl.BlockSpec((B, H), lambda t: (0, 0)),         # h0
                pl.BlockSpec((H, H), lambda t: (0, 0)),         # W_hh^T
            ],
            out_specs=[
                pl.BlockSpec((B, T, H), lambda t: (0, t, 0)),   # outputs block
                pl.BlockSpec((B, H), lambda t: (0, 0)),         # last hidden
            ],
            scratch_shapes=[pltpu.VMEM((B, H), jnp.float32)],
        ),
        compiler_params=pltpu.CompilerParams(
            dimension_semantics=("arbitrary",)),   # true serial recurrence
        cost_estimate=cost,
    )(p, hidden_state, w_hh_t)

    return out, h_last


def rnn_reference(x, w_in, w_hh, b_in, b_hh, hidden_state=None):
    """Plain-JAX reference matching the PyTorch forward exactly."""
    B, S, F = x.shape
    H = w_in.shape[0]
    h = jnp.zeros((B, H), x.dtype) if hidden_state is None else hidden_state
    outs = []
    for i in range(S):
        h = jnp.tanh(x[:, i] @ w_in.T + b_in + h @ w_hh.T + b_hh)
        outs.append(h)
    return jnp.stack(outs, axis=1), h


if __name__ == "__main__":
    # Small shapes: batch=2, seq=8, in_features=16, hidden=32
    B, S, F, H = 2, 8, 16, 32
    key = jax.random.PRNGKey(0)
    k_x, k_win, k_whh, k_bi, k_bh = jax.random.split(key, 5)

    sqrt_k = float(np.sqrt(1.0 / H))
    x = jax.random.normal(k_x, (B, S, F), dtype=jnp.float32)
    w_in = jax.random.uniform(k_win, (H, F), jnp.float32, -sqrt_k, sqrt_k)
    w_hh = jax.random.uniform(k_whh, (H, H), jnp.float32, -sqrt_k, sqrt_k)
    b_in = jax.random.uniform(k_bi, (H,), jnp.float32, -sqrt_k, sqrt_k)
    b_hh = jax.random.uniform(k_bh, (H,), jnp.float32, -sqrt_k, sqrt_k)

    out, h_last = rnn_forward(x, w_in, w_hh, b_in, b_hh)
    out = jax.block_until_ready(out)
    h_last = jax.block_until_ready(h_last)

    ref_out, ref_h = rnn_reference(x, w_in, w_hh, b_in, b_hh)
    assert out.shape == (B, S, H) and h_last.shape == (B, H)
    np.testing.assert_allclose(np.asarray(out), np.asarray(ref_out),
                               rtol=1e-5, atol=1e-5)
    np.testing.assert_allclose(np.asarray(h_last), np.asarray(ref_h),
                               rtol=1e-5, atol=1e-5)
    print("KERNEL_OK")
</pallas_src>

<mosaic_0001>
module attributes {stable_mosaic.version = 11 : i64} {
  func.func @_proj_kernel(%arg0: i32, %arg1: memref<1x8x16xf32, #tpu.memory_space<vmem>>, %arg2: memref<16x32xf32, #tpu.memory_space<vmem>>, %arg3: memref<1x1x32xf32, #tpu.memory_space<vmem>>, %arg4: memref<1x8x32xf32, #tpu.memory_space<vmem>>) attributes {dimension_semantics = [#tpu.dimension_semantics<parallel>], iteration_bounds = array<i64: 2>, scalar_prefetch = 0 : i64, scratch_operands = 0 : i64, tpu.core_type = #tpu.core_type<tc>, window_params = [{transform_indices = @transform_0, window_bounds = array<i64: 1, 8, 16>}, {pipeline_mode = #tpu.pipeline_mode<synchronous>, transform_indices = @transform_1, window_bounds = array<i64: 16, 32>}, {pipeline_mode = #tpu.pipeline_mode<synchronous>, transform_indices = @transform_2, window_bounds = array<i64: 1, 1, 32>}, {transform_indices = @transform_3, window_bounds = array<i64: 1, 8, 32>}]} {
    %c0 = arith.constant 0 : index
    %c0_0 = arith.constant 0 : index
    %c0_1 = arith.constant 0 : index
    %0 = vector.load %arg1[%c0, %c0_0, %c0_1] : memref<1x8x16xf32, #tpu.memory_space<vmem>>, vector<1x8x16xf32>
    %1 = vector.shape_cast %0 : vector<1x8x16xf32> to vector<8x16xf32>
    %c0_2 = arith.constant 0 : index
    %c0_3 = arith.constant 0 : index
    %2 = vector.load %arg2[%c0_2, %c0_3] : memref<16x32xf32, #tpu.memory_space<vmem>>, vector<16x32xf32>
    %cst = arith.constant dense<0.000000e+00> : vector<8x32xf32>
    %3 = tpu.matmul %1, %2, %cst {dimension_numbers = #tpu.dot_dimension_numbers<[1], [0], [0], [1], [0, 0, 1, 1], [], []>} : vector<8x16xf32>, vector<16x32xf32>, vector<8x32xf32> -> vector<8x32xf32>
    %c0_4 = arith.constant 0 : index
    %c0_5 = arith.constant 0 : index
    %c0_6 = arith.constant 0 : index
    %4 = vector.load %arg3[%c0_4, %c0_5, %c0_6] : memref<1x1x32xf32, #tpu.memory_space<vmem>>, vector<1x1x32xf32>
    %5 = vector.shape_cast %4 : vector<1x1x32xf32> to vector<1x32xf32>
    %6 = vector.broadcast %5 : vector<1x32xf32> to vector<8x32xf32>
    %7 = arith.addf %3, %6 : vector<8x32xf32>
    %c0_7 = arith.constant 0 : index
    %c0_8 = arith.constant 0 : index
    %c0_9 = arith.constant 0 : index
    %8 = vector.load %arg4[%c0_7, %c0_8, %c0_9] : memref<1x8x32xf32, #tpu.memory_space<vmem>>, vector<1x8x32xf32>
    %9 = vector.shape_cast %8 : vector<1x8x32xf32> to vector<8x32xf32>
    %10 = vector.shape_cast %7 : vector<8x32xf32> to vector<1x8x32xf32>
    tpu.vector_store %arg4[%c0_7, %c0_8, %c0_9], %10 {strides = array<i32>} : memref<1x8x32xf32, #tpu.memory_space<vmem>>, vector<1x8x32xf32>,
    return
  }
  func.func @transform_0(%arg0: i32) -> (i32, i32, i32) {
    %c0_i32 = arith.constant 0 : i32
    %c0_i32_0 = arith.constant 0 : i32
    %c0_i32_1 = arith.constant 0 : i32
    return %arg0, %c0_i32, %c0_i32_0 : i32, i32, i32
  }
  func.func @transform_1(%arg0: i32) -> (i32, i32) {
    %c0_i32 = arith.constant 0 : i32
    %c0_i32_0 = arith.constant 0 : i32
    %c0_i32_1 = arith.constant 0 : i32
    return %c0_i32, %c0_i32_0 : i32, i32
  }
  func.func @transform_2(%arg0: i32) -> (i32, i32, i32) {
    %c0_i32 = arith.constant 0 : i32
    %c0_i32_0 = arith.constant 0 : i32
    %c0_i32_1 = arith.constant 0 : i32
    %c0_i32_2 = arith.constant 0 : i32
    return %c0_i32, %c0_i32_0, %c0_i32_1 : i32, i32, i32
  }
  func.func @transform_3(%arg0: i32) -> (i32, i32, i32) {
    %c0_i32 = arith.constant 0 : i32
    %c0_i32_0 = arith.constant 0 : i32
    %c0_i32_1 = arith.constant 0 : i32
    return %arg0, %c0_i32, %c0_i32_0 : i32, i32, i32
  }
}

</mosaic_0001>

<llo_original>
// kernel: tpu_custom_call.1
$region0: #{tpu_custom_call.1}
  #allocation0 [shape = 'u32[]', space=smem, size = 0x4, offset = 0x4, fixed_abs, tag = 'smem constant byte address 0x4 - core index']
  #allocation1 [shape = 'u32[144,128]{1,0:T(1,128)}', space=vmem, size = 0x12000, scoped, tag = 'internal scratch']
  %s0 = inlined_call_operand.hbm [shape: f32[2,8,16], index: 0, kind: input, shape index: {}]
  %s1 = inlined_call_operand.hbm [shape: f32[16,32], index: 1, kind: input, shape index: {}]
  %s2 = inlined_call_operand.vmem [shape: f32[1,1,32], index: 2, kind: input, shape index: {}]
  %s3 = inlined_call_operand.hbm [shape: f32[2,8,32], index: 3, kind: output, shape index: {}]
  %s4 = sld [smem:[#allocation0]]
  $region53: #{tpu_custom_call.1} parent=0
    _
  %s6 = ssub.s32 1, %s4
  %s7 = scalar_select 0, %s6, %s4
  $region1: #{tpu_custom_call.1} parent=0
    #allocation2 [shape = 'u8[8192]{0}', space=vmem, size = 0x2000, scoped, tag = 'input window, operand 0']
    #allocation3 [shape = 's32[2]{0}', space=sflag, size = 0x8, scoped, tag = 'scoped memory for tpu_custom_call.1']
    #allocation4 [shape = 's32[2]{0}', space=sflag, size = 0x8, scoped, tag = 'scoped memory for tpu_custom_call.1']
    #allocation5 [shape = 'u8[8192]{0}', space=vmem, size = 0x2000, scoped, tag = 'input window, operand 1, single buffered']
    #allocation6 [shape = 's32[1]{0}', space=sflag, size = 0x4, scoped, tag = 'scoped memory for tpu_custom_call.1']
    #allocation7 [shape = 'u8[8192]{0}', space=vmem, size = 0x2000, scoped, tag = 'output window, operand 0']
    %8 = vsyncpa [#allocation3], 0
    %s9 = scalar_lea.sflag [#allocation3], 1
    %10 = vsyncpa %s9, 0
    %11 = vsyncpa [#allocation6], 0
    %12 = vsyncpa [#allocation4], 0
    %s13 = scalar_lea.sflag [#allocation4], 1
    %14 = vsyncpa %s13, 0
    loop: start=0, step=1, limit=4
    $region2: #{tpu_custom_call.1} parent=1 // loop_pre_header
      _
    $region3: #{tpu_custom_call.1} parent=1 // loop_header
      %s16 = sphi 0, %s20
      %p17 = scmp.ge.s32.totalorder %s16, 4
      %s26 = sphi 0, %s28
      %s29 = sphi 0, %s26
      %s30 = sphi 0, %s29
      %s46 = sphi 0, %s30
      %s50 = sphi 0, %s50
      %s52 = sphi 0, %s50
      %s53 = sphi 0, %s52
      %s67 = sphi 0, %s53
      %s71 = sphi 0, %s71
      %s73 = sphi 0, %s71
      %s74 = sphi 0, %s73
      %s88 = sphi 0, %s74
      %s94 = sphi 0, %s96
      %s97 = sphi 0, %s94
      %s98 = sphi 0, %s97
      %s114 = sphi 0, %s98
    $region4: #{tpu_custom_call.1} parent=1 // loop_header_branch
      %19 = sbr.rel (%p17) target = $region8
    $region5: #{tpu_custom_call.1} parent=1 // loop_body
      %s21 = ssub.s32 %s16, 1
      %s22 = ssub.s32 %s16, 2
      %s23 = sadd.s32 %s16, 1
      %s24 = ssub.s32 %s16, %s23
      %p25 = scmp.eq.s32.totalorder %s24, 0
      %s27 = sadd.s32 %s26, 1
      %s28 = scalar_select %p25, %s26, %s27
      %p31 = pneg %p25
      %p32 = scmp.eq.s32.totalorder %s16, 1
      %p33 = por %p31, %p32
      %p34 = scmp.ne.s32.totalorder %s26, %s29
      %p35 = scmp.eq.s32.totalorder %s16, 0
      %p36 = por %p34, %p35
      %p37 = scmp.ne.s32.totalorder %s26, %s29
      %p38 = scmp.eq.s32.totalorder %s21, 1
      %p39 = por %p37, %p38
      %p40 = scmp.ne.s32.totalorder %s29, %s30
      %p41 = scmp.eq.s32.totalorder %s21, 0
      %p42 = por %p40, %p41
      %p43 = scmp.ne.s32.totalorder %s29, %s30
      %p44 = scmp.eq.s32.totalorder %s22, 1
      %p45 = por %p43, %p44
      %p47 = scmp.ne.s32.totalorder %s30, %s46
      %p48 = scmp.eq.s32.totalorder %s22, 0
      %p49 = por %p47, %p48
      %s51 = sadd.s32 %s50, 1
      %p54 = scmp.eq.s32.totalorder %s16, 1
      %p55 = scmp.ne.s32.totalorder %s50, %s52
      %p56 = scmp.eq.s32.totalorder %s16, 0
      %p57 = por %p55, %p56
      %p58 = scmp.ne.s32.totalorder %s50, %s52
      %p59 = scmp.eq.s32.totalorder %s21, 1
      %p60 = por %p58, %p59
      %p61 = scmp.ne.s32.totalorder %s52, %s53
      %p62 = scmp.eq.s32.totalorder %s21, 0
      %p63 = por %p61, %p62
      %p64 = scmp.ne.s32.totalorder %s52, %s53
      %p65 = scmp.eq.s32.totalorder %s22, 1
      %p66 = por %p64, %p65
      %p68 = scmp.ne.s32.totalorder %s53, %s67
      %p69 = scmp.eq.s32.totalorder %s22, 0
      %p70 = por %p68, %p69
      %s72 = sadd.s32 %s71, 1
      %p75 = scmp.eq.s32.totalorder %s16, 1
      %p76 = scmp.ne.s32.totalorder %s71, %s73
      %p77 = scmp.eq.s32.totalorder %s16, 0
      %p78 = por %p76, %p77
      %p79 = scmp.ne.s32.totalorder %s71, %s73
      %p80 = scmp.eq.s32.totalorder %s21, 1
      %p81 = por %p79, %p80
      %p82 = scmp.ne.s32.totalorder %s73, %s74
      %p83 = scmp.eq.s32.totalorder %s21, 0
      %p84 = por %p82, %p83
      %p85 = scmp.ne.s32.totalorder %s73, %s74
      %p86 = scmp.eq.s32.totalorder %s22, 1
      %p87 = por %p85, %p86
      %p89 = scmp.ne.s32.totalorder %s74, %s88
      %p90 = scmp.eq.s32.totalorder %s22, 0
      %p91 = por %p89, %p90
      %s92 = ssub.s32 %s16, %s23
      %p93 = scmp.eq.s32.totalorder %s92, 0
      %s95 = sadd.s32 %s94, 1
      %s96 = scalar_select %p93, %s94, %s95
      %p99 = pneg %p93
      %p100 = scmp.eq.s32.totalorder %s16, 1
      %p101 = por %p99, %p100
      %p102 = scmp.ne.s32.totalorder %s94, %s97
      %p103 = scmp.eq.s32.totalorder %s16, 0
      %p104 = por %p102, %p103
      %p105 = scmp.ne.s32.totalorder %s94, %s97
      %p106 = scmp.eq.s32.totalorder %s21, 1
      %p107 = por %p105, %p106
      %p108 = scmp.ne.s32.totalorder %s97, %s98
      %p109 = scmp.eq.s32.totalorder %s21, 0
      %p110 = por %p108, %p109
      %p111 = scmp.ne.s32.totalorder %s97, %s98
      %p112 = scmp.eq.s32.totalorder %s22, 1
      %p113 = por %p111, %p112
      %p115 = scmp.ne.s32.totalorder %s98, %s114
      %p116 = scmp.eq.s32.totalorder %s22, 0
      %p117 = por %p115, %p116
      %p118 = scmp.le.s32.totalorder 1, %s16
      %p119 = scmp.lt.s32.totalorder %s16, 3
      %p120 = pnand %p118, %p119
      %p121 = pneg %p120
      // Predicated region
      $region9: #{tpu_custom_call.1} parent=5 // pred_check
        _
      $region10: #{tpu_custom_call.1} parent=5 // pred_check_branch
        %123 = sbr.rel (%p120) target = $region12
      $region11: #{tpu_custom_call.1} parent=5 // pred_region
        %s124 = ssub.s32 %s16, 1
        // Predicated region
        $region13: #{tpu_custom_call.1} parent=11 // pred_check
          %p125 = pneg %p63
        $region14: #{tpu_custom_call.1} parent=11 // pred_check_branch
          %127 = sbr.rel (%p125) target = $region16
        $region15: #{tpu_custom_call.1} parent=11 // pred_region
          %s129 = ssub.s32 256, 256
          %130 = vsyncadd [#allocation6], %s129
          %s131 = sshll.u32 [#allocation5], 4
          %s132 = int_to_ptr.vmem [resolvable:$true] %s131
          %137 = dma.hbm_to_vmem [thread:$0]  %s1, 256, %s132, [#allocation6], 128, 128, 8
        $region16: #{tpu_custom_call.1} parent=11 // pred_fallthru
          _
        // Predicated region
        $region17: #{tpu_custom_call.1} parent=11 // pred_check
          %p138 = pneg %p84
        $region18: #{tpu_custom_call.1} parent=11 // pred_check_branch
          %140 = sbr.rel (%p138) target = $region20
        $region19: #{tpu_custom_call.1} parent=11 // pred_region
          _
        $region20: #{tpu_custom_call.1} parent=11 // pred_fallthru
          _
      $region12: #{tpu_custom_call.1} parent=5 // pred_fallthru
        _
      %p141 = scmp.lt.s32.totalorder %s16, 2
      // Predicated region
      $region21: #{tpu_custom_call.1} parent=5 // pred_check
        %p142 = pneg %p141
      $region22: #{tpu_custom_call.1} parent=5 // pred_check_branch
        %144 = sbr.rel (%p142) target = $region24
      $region23: #{tpu_custom_call.1} parent=5 // pred_region
        // Predicated region
        $region25: #{tpu_custom_call.1} parent=23 // pred_check
          %p145 = pneg %p36
        $region26: #{tpu_custom_call.1} parent=23 // pred_check_branch
          %147 = sbr.rel (%p145) target = $region28
        $region27: #{tpu_custom_call.1} parent=23 // pred_region
          %s148 = sand.u32 %s26, 1
          %s149 = scalar_lea.sflag [#allocation3], %s148
          %s150 = sand.u32 %s26, 1
          %s151 = smul.addr %s150, 8
          %s152 = scalar_lea.vmem [#allocation2], %s151
          %s154 = ssub.s32 128, 128
          %155 = vsyncadd %s149, %s154
          %s156 = smul.addr %s16, 128
          %s157 = scalar_lea.hbm %s0, %s156
          %s159 = sshll.u32 %s152, 4
          %s160 = int_to_ptr.vmem [resolvable:$true] %s159
          %162 = dma.hbm_to_vmem [thread:$0]  %s157, 128, %s160, %s149
        $region28: #{tpu_custom_call.1} parent=23 // pred_fallthru
          _
      $region24: #{tpu_custom_call.1} parent=5 // pred_fallthru
        _
      %p163 = scmp.le.s32.totalorder 1, %s16
      %p164 = scmp.lt.s32.totalorder %s16, 3
      %p165 = pnand %p163, %p164
      %p166 = pneg %p165
      // Predicated region
      $region29: #{tpu_custom_call.1} parent=5 // pred_check
        _
      $region30: #{tpu_custom_call.1} parent=5 // pred_check_branch
        %168 = sbr.rel (%p165) target = $region32
      $region31: #{tpu_custom_call.1} parent=5 // pred_region
        %s169 = ssub.s32 %s16, 1
        %s170 = sand.u32 %s29, 1
        %s171 = scalar_lea.sflag [#allocation3], %s170
        %s172 = sand.u32 %s29, 1
        %s173 = smul.addr %s172, 8
        %s174 = scalar_lea.vmem [#allocation2], %s173
        // Predicated region
        $region33: #{tpu_custom_call.1} parent=31 // pred_check
          %p175 = pneg %p42
        $region34: #{tpu_custom_call.1} parent=31 // pred_check_branch
          %177 = sbr.rel (%p175) target = $region36
        $region35: #{tpu_custom_call.1} parent=31 // pred_region
          %178 = dma.done %s171, 128
        $region36: #{tpu_custom_call.1} parent=31 // pred_fallthru
          _
        // Predicated region
        $region37: #{tpu_custom_call.1} parent=31 // pred_check
          %p179 = pneg %p63
        $region38: #{tpu_custom_call.1} parent=31 // pred_check_branch
          %181 = sbr.rel (%p179) target = $region40
        $region39: #{tpu_custom_call.1} parent=31 // pred_region
          %182 = dma.done [#allocation6], 256
        $region40: #{tpu_custom_call.1} parent=31 // pred_fallthru
          _
        %s183 = sand.u32 %s29, 1
        %s184 = scalar_lea.sflag [#allocation3], %s183
        %s185 = sand.u32 %s29, 1
        %s186 = smul.addr %s185, 8
        %s187 = scalar_lea.vmem [#allocation2], %s186
        %p188 = pneg %p42
        %p189 = pneg %p39
        %p190 = pneg %p63
        %p191 = pneg %p60
        %p192 = pneg %p84
        %p193 = pneg %p81
        %p194 = pneg %p110
        %p195 = pneg %p107
        %s196 = sand.u32 %s97, 1
        %s197 = scalar_lea.sflag [#allocation4], %s196
        %s198 = sand.u32 %s97, 1
        %s199 = smul.addr %s198, 8
        %s200 = scalar_lea.vmem [#allocation7], %s199
        %v201 = vld [vmem:[%s174] sm:$0xff]
        %v202 = vld [vmem:[#allocation5] sm:$0xff]
        %v203 = vld [vmem:[#allocation5 + $0x8] sm:$0xff]
        %v204 = vld [vmem:[%s2] sm:$0x1]
        %v206 = vlaneseq
        %v207 = vshrl.u32 %v206, 7
        %v208 = vsub.s32 0, %v207
        %v209 = vrot.slane %v204, %v208
        %vm211 = vcmask 130048
        %v213 = vsel %vm211, %v201, 0
        %215 = vmatprep.subr.mxu0 0.0
        %216 = vmatpush1.msra.mxu0 0.0
        %217 = vmatprep.subr.mxu0 0.0
        %218 = vmatpush1.msra.mxu0 0.0
        %219 = vmatprep.subr.mxu0 0.0
        %220 = vmatpush1.msra.mxu0 0.0
        %221 = vmatprep.subr.mxu0 0.0
        %222 = vmatpush1.msra.mxu0 0.0
        %223 = vmatprep.subr.mxu0 0.0
        %224 = vmatpush1.msra.mxu0 0.0
        %225 = vmatprep.subr.mxu0 0.0
        %226 = vmatpush1.msra.mxu0 0.0
        %227 = vmatprep.subr.mxu0 0.0
        %228 = vmatpush1.msra.mxu0 0.0
        %229 = vmatprep.subr.mxu0 0.0
        %230 = vmatpush1.msra.mxu0 0.0
        %231 = vmatprep.subr.mxu0 0.0
        %232 = vmatpush1.msra.mxu0 0.0
        %233 = vmatprep.subr.mxu0 0.0
        %234 = vmatpush1.msra.mxu0 0.0
        %235 = vmatprep.subr.mxu0 0.0
        %236 = vmatpush1.msra.mxu0 0.0
        %237 = vmatprep.subr.mxu0 0.0
        %238 = vmatpush1.msra.mxu0 0.0
        %239 = vmatprep.subr.mxu0 0.0
        %240 = vmatpush1.msra.mxu0 0.0
        %241 = vmatprep.subr.mxu0 0.0
        %242 = vmatpush1.msra.mxu0 0.0
        %243 = vmatprep.subr.mxu0 0.0
        %244 = vmatpush1.msra.mxu0 %v203
        %245 = vmatprep.subr.mxu0 0.0
        %246 = vmatpush1.msra.mxu0 %v202
        %247 = vmatprep.subr.mxu0 0.0
        %248 = vmatpush2.msra.mxu0 0.0
        %249 = vmatprep.subr.mxu0 0.0
        %250 = vmatpush2.msra.mxu0 0.0
        %251 = vmatprep.subr.mxu0 0.0
        %252 = vmatpush2.msra.mxu0 0.0
        %253 = vmatprep.subr.mxu0 0.0
        %254 = vmatpush2.msra.mxu0 0.0
        %255 = vmatprep.subr.mxu0 0.0
        %256 = vmatpush2.msra.mxu0 0.0
        %257 = vmatprep.subr.mxu0 0.0
        %258 = vmatpush2.msra.mxu0 0.0
        %259 = vmatprep.subr.mxu0 0.0
        %260 = vmatpush2.msra.mxu0 0.0
        %261 = vmatprep.subr.mxu0 0.0
        %262 = vmatpush2.msra.mxu0 0.0
        %263 = vmatprep.subr.mxu0 0.0
        %264 = vmatpush2.msra.mxu0 0.0
        %265 = vmatprep.subr.mxu0 0.0
        %266 = vmatpush2.msra.mxu0 0.0
        %267 = vmatprep.subr.mxu0 0.0
        %268 = vmatpush2.msra.mxu0 0.0
        %269 = vmatprep.subr.mxu0 0.0
        %270 = vmatpush2.msra.mxu0 0.0
        %271 = vmatprep.subr.mxu0 0.0
        %272 = vmatpush2.msra.mxu0 0.0
        %273 = vmatprep.subr.mxu0 0.0
        %274 = vmatpush2.msra.mxu0 0.0
        %275 = vmatprep.subr.mxu0 0.0
        %276 = vmatpush2.msra.mxu0 0.0
        %277 = vmatprep.subr.mxu0 0.0
        %278 = vmatpush2.msra.mxu0 0.0
        %279 = vmatprep.mubr.f32.mxu0 0.0
        %280 = vmatmul.mubr.f32.gmra.mxu0 %v213
        %v281 = vpop.f32.mrf.mxu0
        %v282 = vadd.f32 %v209, %v281
        %v283 = vpop.f32.mrf.mxu0
        %284 = vdwg.mxu0
        %vm285 = vcmask 261120
        %286 = vst.msk [vmem:[%s200] sm:$0xff] %vm285, %v282
        %s287 = sand.u32 %s97, 1
        %s288 = scalar_lea.sflag [#allocation4], %s287
        %s289 = sand.u32 %s97, 1
        %s290 = smul.addr %s289, 8
        %s291 = scalar_lea.vmem [#allocation7], %s290
        // Predicated region
        $region41: #{tpu_custom_call.1} parent=31 // pred_check
          %p292 = pneg %p107
        $region42: #{tpu_custom_call.1} parent=31 // pred_check_branch
          %294 = sbr.rel (%p292) target = $region44
        $region43: #{tpu_custom_call.1} parent=31 // pred_region
          %s296 = ssub.s32 128, 128
          %297 = vsyncadd %s288, %s296
          %s298 = smul.addr %s21, 128
          %s299 = scalar_lea.hbm %s3, %s298
          %s301 = sshll.u32 %s291, 4
          %s302 = int_to_ptr.vmem [resolvable:$true] %s301
          %304 = dma.vmem_to_hbm [thread:$0]  %s302, 128, %s299, %s288
        $region44: #{tpu_custom_call.1} parent=31 // pred_fallthru
          _
      $region32: #{tpu_custom_call.1} parent=5 // pred_fallthru
        _
      %p305 = scmp.le.s32.totalorder 2, %s16
      // Predicated region
      $region45: #{tpu_custom_call.1} parent=5 // pred_check
        %p306 = pneg %p305
      $region46: #{tpu_custom_call.1} parent=5 // pred_check_branch
        %308 = sbr.rel (%p306) target = $region48
      $region47: #{tpu_custom_call.1} parent=5 // pred_region
        %s309 = ssub.s32 %s16, 2
        // Predicated region
        $region49: #{tpu_custom_call.1} parent=47 // pred_check
          %p310 = pneg %p113
        $region50: #{tpu_custom_call.1} parent=47 // pred_check_branch
          %312 = sbr.rel (%p310) target = $region52
        $region51: #{tpu_custom_call.1} parent=47 // pred_region
          %s313 = sand.u32 %s98, 1
          %s314 = scalar_lea.sflag [#allocation4], %s313
          %s315 = sand.u32 %s98, 1
          %s316 = smul.addr %s315, 8
          %s317 = scalar_lea.vmem [#allocation7], %s316
          %318 = dma.done %s314, 128
        $region52: #{tpu_custom_call.1} parent=47 // pred_fallthru
          _
      $region48: #{tpu_custom_call.1} parent=5 // pred_fallthru
        _
    $region6: #{tpu_custom_call.1} parent=1 // loop_footer
      %s20 = sadd.s32 1, %s16
    $region7: #{tpu_custom_call.1} parent=1 // loop_footer_branch
      %15 = sbr.rel target = $region3
    $region8: #{tpu_custom_call.1} parent=1 // loop_exit
      _
    %319 = vsyncpa [#allocation3], 1
    %s320 = scalar_lea.sflag [#allocation3], 1
    %321 = vsyncpa %s320, 1
    %322 = vsyncpa [#allocation6], 1
    %323 = vsyncpa [#allocation4], 1
    %s324 = scalar_lea.sflag [#allocation4], 1
    %325 = vsyncpa %s324, 1

</llo_original>
